<compile_context>
chip_gen: v5e
topology: v5e:2x2
jax: 0.10.0
libtpu: 0.0.40
codegen_flags: <defaults>
</compile_context>

<pallas_src>
import functools

import jax
import jax.numpy as jnp
from jax import lax
from jax.experimental import pallas as pl
from jax.experimental.pallas import tpu as pltpu

_LANES = 128
_SUBLANES = 8


def _round_up(v, m):
    return ((v + m - 1) // m) * m


# ----------------------------------------------------------------------------
# Kernel 1: the module forward  (x @ W.T, bias-free linear)
# ----------------------------------------------------------------------------
def _linear_kernel(x_ref, wt_ref, o_ref):
    # x_ref: (tm, K), wt_ref: (K, O), o_ref: (tm, O)
    o_ref[...] = jnp.dot(
        x_ref[...], wt_ref[...], preferred_element_type=jnp.float32
    ).astype(o_ref.dtype)


def linear_coxph_forward(x, weight, *, tm=2048, compute_dtype=None):
    """Forward of linearCoxPH_Regression: x @ weight.T (no bias).

    x: (N, inputSize); weight: (outputSize, inputSize) (PyTorch nn.Linear layout).
    tm: rows per grid step. Large tiles amortise per-step pipeline overhead —
        the kernel is HBM-bandwidth bound since K is tiny.
    compute_dtype: optionally jnp.bfloat16 to halve x's HBM traffic on
        v6e/v7x; MXU accumulation stays f32 via preferred_element_type.
    """
    n, k = x.shape
    o = weight.shape[0]
    cdt = jnp.float32 if compute_dtype is None else compute_dtype
    xf = x.astype(cdt)
    wt = weight.astype(cdt).T                       # (K, O): layout plumbing outside

    tm = int(min(tm, _round_up(max(n, _SUBLANES), _SUBLANES)))
    tm = _round_up(tm, _SUBLANES)
    grid = (pl.cdiv(n, tm),)                        # ragged last block: Pallas masks it

    return pl.pallas_call(
        _linear_kernel,
        out_shape=jax.ShapeDtypeStruct((n, o), jnp.float32),
        grid=grid,
        in_specs=[pl.BlockSpec((tm, k), lambda i: (i, 0)),
                  pl.BlockSpec((k, o), lambda i: (0, 0))],    # weight stays resident
        out_specs=pl.BlockSpec((tm, o), lambda i: (i, 0)),
        compiler_params=pltpu.CompilerParams(
            dimension_semantics=("parallel",)),
    )(xf, wt)


# ----------------------------------------------------------------------------
# Kernel 2: Cox PH negative partial log-likelihood (streaming, gridded)
# ----------------------------------------------------------------------------
def _negloglik_kernel(tri_ref, tris_ref, idx_ref, risk_ref, e_ref, out_ref,
                      mc_ref, sc_ref, acc_ref, esum_ref, *, n):
    """One (rb, 128) block of samples per grid step (row-major sample order).

    Carried scratch state (persists across the sequential grid):
      mc_ref, sc_ref : running max / scaled sum of exp(risk) over all previous
                       samples (cumsum carry in log-sum-exp form),
      acc_ref        : running sum of E * (risk - log(cumsum(exp(risk)))),
      esum_ref       : running sum of E.
    """
    b = pl.program_id(0)
    rb, lanes = risk_ref.shape

    @pl.when(b == 0)
    def _():
        mc_ref[...] = jnp.full_like(mc_ref, -jnp.inf)
        sc_ref[...] = jnp.zeros_like(sc_ref)
        acc_ref[...] = jnp.zeros_like(acc_ref)
        esum_ref[...] = jnp.zeros_like(esum_ref)

    risk = risk_ref[...]                                      # (rb, 128)
    valid = (idx_ref[...] + b * (rb * lanes)) < n             # mask pad / OOB tail
    e = jnp.where(valid, e_ref[...], 0.0)

    # Per-block max shift (streaming log-cumsum-exp).
    risk_m = jnp.where(valid, risk, -jnp.inf)
    m_b = jnp.max(jnp.max(risk_m, axis=1, keepdims=True), axis=0, keepdims=True)
    hr = jnp.where(valid, jnp.exp(risk - m_b), 0.0)           # (rb, 128)

    # Inclusive prefix along the 128 lanes via the hoisted lower-tri constant.
    row_csum = jnp.dot(hr, tri_ref[...], preferred_element_type=jnp.float32)
    # Cross-row (sublane) exclusive carry inside the block: tiny constant
    # (rb, rb) strict-lower-tri — O(N) total cost, constant-size mask.
    row_tot = jnp.sum(hr, axis=1, keepdims=True)              # (rb, 1)
    carry_rows = jnp.dot(tris_ref[...],
                         jnp.broadcast_to(row_tot, (rb, lanes)),
                         preferred_element_type=jnp.float32)
    p = row_csum + carry_rows                 # inclusive prefix of exp(risk - m_b)

    # Combine with the carry from previous blocks (logaddexp-style rescale).
    mc = mc_ref[...]                                          # (1, 1)
    sc = sc_ref[...]                                          # (1, 1)
    m_new = jnp.maximum(mc, m_b)
    carry_scaled = jnp.exp(mc - m_new) * sc
    blk_scale = jnp.exp(m_b - m_new)
    log_risk = jnp.log(carry_scaled + blk_scale * p) + m_new  # (rb, 128)

    term = jnp.where(valid, e * (risk - log_risk), 0.0)
    acc_ref[...] += jnp.sum(jnp.sum(term, axis=1, keepdims=True),
                            axis=0, keepdims=True)
    esum_ref[...] += jnp.sum(jnp.sum(e, axis=1, keepdims=True),
                             axis=0, keepdims=True)

    # Update the cumsum carry for the next block.
    blk_tot = jnp.sum(row_tot, axis=0, keepdims=True)         # (1, 1)
    sc_ref[...] = carry_scaled + blk_scale * blk_tot
    mc_ref[...] = m_new

    @pl.when(b == pl.num_programs(0) - 1)
    def _():
        # Same semantics as the reference: sum(E) == 0 -> inf/NaN (no guard).
        out_ref[...] = -acc_ref[...] / esum_ref[...]


def neg_log_likelihood(prediction, targets, *, block_rows=128):
    """Cox PH negative log-likelihood of risk scores `prediction` ((N,1) or (N,))
    with event indicators `targets` (N,). Samples must already be sorted by
    survival time (descending), exactly like the PyTorch reference."""
    n = int(prediction.shape[0])
    risk = prediction.reshape(n).astype(jnp.float32)
    e = targets.reshape(n).astype(jnp.float32)

    # (R, 128) sublane-dense layout; R rounded up to a multiple of 8 sublanes.
    r_rows = pl.cdiv(n, _LANES)
    r8 = _round_up(max(r_rows, _SUBLANES), _SUBLANES)
    rb = int(min(_round_up(block_rows, _SUBLANES), r8))       # rows per grid block
    n_lay = r8 * _LANES
    if n_lay != n:
        # Pad value irrelevant: the kernel masks by element index < n.
        # Skipped entirely when N is already (8*128)-aligned.
        risk = jnp.pad(risk, (0, n_lay - n))
        e = jnp.pad(e, (0, n_lay - n))
    risk2d = risk.reshape(r8, _LANES)
    e2d = e.reshape(r8, _LANES)

    # Constants hoisted out of the kernel: constant index_map => block revisit,
    # DMA'd once, never rebuilt per grid step.
    r_i = lax.broadcasted_iota(jnp.int32, (_LANES, _LANES), 0)
    c_i = lax.broadcasted_iota(jnp.int32, (_LANES, _LANES), 1)
    tri = (r_i <= c_i).astype(jnp.float32)                    # lane inclusive prefix
    rr = lax.broadcasted_iota(jnp.int32, (rb, rb), 0)
    cc = lax.broadcasted_iota(jnp.int32, (rb, rb), 1)
    tris = (cc < rr).astype(jnp.float32)                      # strict row carry
    rowid = lax.broadcasted_iota(jnp.int32, (rb, _LANES), 0)
    laneid = lax.broadcasted_iota(jnp.int32, (rb, _LANES), 1)
    idx0 = rowid * _LANES + laneid                            # within-block element id

    nblk = pl.cdiv(r8, rb)

    # TODO(synk): on v7x, split into a 'parallel' per-block pass + tiny
    # sequential combine so the heavy DMA/EUP work shards across both TCs.
    out = pl.pallas_call(
        functools.partial(_negloglik_kernel, n=n),
        out_shape=jax.ShapeDtypeStruct((1, 1), jnp.float32),
        grid=(nblk,),
        in_specs=[
            pl.BlockSpec((_LANES, _LANES), lambda b: (0, 0)),   # tri
            pl.BlockSpec((rb, rb), lambda b: (0, 0)),           # tris
            pl.BlockSpec((rb, _LANES), lambda b: (0, 0)),        # idx0
            pl.BlockSpec((rb, _LANES), lambda b: (b, 0)),        # risk block
            pl.BlockSpec((rb, _LANES), lambda b: (b, 0)),        # events block
        ],
        out_specs=pl.BlockSpec((1, 1), lambda b: (0, 0)),
        scratch_shapes=[pltpu.VMEM((1, 1), jnp.float32)] * 4,   # m_c, s_c, acc, esum
        compiler_params=pltpu.CompilerParams(
            dimension_semantics=("arbitrary",)),                # carried scan
    )(tri, tris, idx0, risk2d, e2d)
    return out[0, 0]


# ----------------------------------------------------------------------------
# Pure-JAX references
# ----------------------------------------------------------------------------
def _reference_linear(x, weight):
    return x.astype(jnp.float32) @ weight.astype(jnp.float32).T


def _reference_nll(prediction, targets):
    risk = prediction.reshape(-1, 1).astype(jnp.float32)      # (N, 1)
    e = targets.astype(jnp.float32)                           # (N,)
    hazard_ratio = jnp.exp(risk)
    log_risk = jnp.log(jnp.cumsum(hazard_ratio, axis=0))
    uncensored = risk - log_risk
    censored = uncensored.T * e
    return -jnp.sum(censored) / jnp.sum(e)


if __name__ == "__main__":
    key = jax.random.PRNGKey(0)
    kx, kw, ke = jax.random.split(key, 3)

    N, IN_FEATURES, OUT_FEATURES = 256, 32, 1
    x = jax.random.normal(kx, (N, IN_FEATURES), dtype=jnp.float32)
    # nn.Linear(inputSize, outputSize, bias=False) weight layout: (out, in).
    weight = jax.random.normal(kw, (OUT_FEATURES, IN_FEATURES),
                               dtype=jnp.float32) / jnp.sqrt(IN_FEATURES)

    # Module forward: risk scores.
    pred = jax.block_until_ready(linear_coxph_forward(x, weight))
    ref_pred = _reference_linear(x, weight)
    assert pred.shape == (N, OUT_FEATURES)
    assert jnp.allclose(pred, ref_pred, rtol=1e-3, atol=1e-3), (
        float(jnp.max(jnp.abs(pred - ref_pred))))

    # Companion Cox PH loss on those predictions.
    events = (jax.random.uniform(ke, (N,)) > 0.5).astype(jnp.float32)
    events = events.at[0].set(1.0)   # guarantee at least one observed event
    nll = jax.block_until_ready(neg_log_likelihood(pred, events))
    ref_nll = _reference_nll(pred, events)
    assert jnp.allclose(nll, ref_nll, rtol=1e-3, atol=1e-3), (float(nll), float(ref_nll))

    print("KERNEL_OK")
</pallas_src>

<mosaic_0001>
module attributes {stable_mosaic.version = 11 : i64} {
  func.func @_linear_kernel(%arg0: i32, %arg1: memref<256x32xf32, #tpu.memory_space<vmem>>, %arg2: memref<32x1xf32, #tpu.memory_space<vmem>>, %arg3: memref<256x1xf32, #tpu.memory_space<vmem>>) attributes {dimension_semantics = [#tpu.dimension_semantics<parallel>], iteration_bounds = array<i64: 1>, scalar_prefetch = 0 : i64, scratch_operands = 0 : i64, tpu.core_type = #tpu.core_type<tc>, window_params = [{transform_indices = @transform_0, window_bounds = array<i64: 256, 32>}, {pipeline_mode = #tpu.pipeline_mode<synchronous>, transform_indices = @transform_1, window_bounds = array<i64: 32, 1>}, {transform_indices = @transform_2, window_bounds = array<i64: 256, 1>}]} {
    %c0 = arith.constant 0 : index
    %c0_0 = arith.constant 0 : index
    %0 = vector.load %arg1[%c0, %c0_0] : memref<256x32xf32, #tpu.memory_space<vmem>>, vector<256x32xf32>
    %c0_1 = arith.constant 0 : index
    %c0_2 = arith.constant 0 : index
    %1 = vector.load %arg2[%c0_1, %c0_2] : memref<32x1xf32, #tpu.memory_space<vmem>>, vector<32x1xf32>
    %cst = arith.constant dense<0.000000e+00> : vector<256x1xf32>
    %2 = tpu.matmul %0, %1, %cst {dimension_numbers = #tpu.dot_dimension_numbers<[1], [0], [0], [1], [0, 0, 1, 1], [], []>} : vector<256x32xf32>, vector<32x1xf32>, vector<256x1xf32> -> vector<256x1xf32>
    %c0_3 = arith.constant 0 : index
    %c0_4 = arith.constant 0 : index
    %3 = vector.load %arg3[%c0_3, %c0_4] : memref<256x1xf32, #tpu.memory_space<vmem>>, vector<256x1xf32>
    tpu.vector_store %arg3[%c0_3, %c0_4], %2 {strides = array<i32>} : memref<256x1xf32, #tpu.memory_space<vmem>>, vector<256x1xf32>,
    return
  }
  func.func @transform_0(%arg0: i32) -> (i32, i32) {
    %c0_i32 = arith.constant 0 : i32
    %c0_i32_0 = arith.constant 0 : i32
    return %arg0, %c0_i32 : i32, i32
  }
  func.func @transform_1(%arg0: i32) -> (i32, i32) {
    %c0_i32 = arith.constant 0 : i32
    %c0_i32_0 = arith.constant 0 : i32
    %c0_i32_1 = arith.constant 0 : i32
    return %c0_i32, %c0_i32_0 : i32, i32
  }
  func.func @transform_2(%arg0: i32) -> (i32, i32) {
    %c0_i32 = arith.constant 0 : i32
    %c0_i32_0 = arith.constant 0 : i32
    return %arg0, %c0_i32 : i32, i32
  }
}

</mosaic_0001>

<llo_original>
// kernel: tpu_custom_call.1
$region0: #{tpu_custom_call.1}
  #allocation0 [shape = 'u32[]', space=smem, size = 0x4, offset = 0x4, fixed_abs, tag = 'smem constant byte address 0x4 - core index']
  #allocation1 [shape = 'u32[72,128]{1,0:T(1,128)}', space=vmem, size = 0x9000, scoped, tag = 'internal scratch']
  %s0 = inlined_call_operand.vmem [shape: f32[256,32], index: 0, kind: input, shape index: {}]
  %s1 = inlined_call_operand.vmem [shape: f32[32,1], index: 1, kind: input, shape index: {}]
  %s2 = inlined_call_operand.vmem [shape: f32[256,1], index: 2, kind: output, shape index: {}]
  %s3 = sld [smem:[#allocation0]]
  $region18: #{tpu_custom_call.1} parent=0
    _
  %s5 = ssub.s32 1, %s3
  %s6 = scalar_select 0, %s5, %s3
  // Predicated region
  $region2: #{tpu_custom_call.1} parent=0 // pred_check
    _
  $region3: #{tpu_custom_call.1} parent=0 // pred_check_branch
    %8 = sbr.rel (0) target = $region5
  $region4: #{tpu_custom_call.1} parent=0 // pred_region
    _
  $region5: #{tpu_custom_call.1} parent=0 // pred_fallthru
    _
  // Predicated region
  $region6: #{tpu_custom_call.1} parent=0 // pred_check
    _
  $region7: #{tpu_custom_call.1} parent=0 // pred_check_branch
    %10 = sbr.rel (0) target = $region9
  $region8: #{tpu_custom_call.1} parent=0 // pred_region
    _
  $region9: #{tpu_custom_call.1} parent=0 // pred_fallthru
    _
  %v11 = vld [vmem:[%s0] sm:$0xff]
  %v12 = vld [vmem:[%s0 + $0x8] sm:$0xff]
  %v13 = vld [vmem:[%s0 + $0x10] sm:$0xff]
  %v14 = vld [vmem:[%s0 + $0x18] sm:$0xff]
  %v15 = vld [vmem:[%s0 + $0x20] sm:$0xff]
  %v16 = vld [vmem:[%s0 + $0x28] sm:$0xff]
  %v17 = vld [vmem:[%s0 + $0x30] sm:$0xff]
  %v18 = vld [vmem:[%s0 + $0x38] sm:$0xff]
  %v19 = vld [vmem:[%s0 + $0x40] sm:$0xff]
  %v20 = vld [vmem:[%s0 + $0x48] sm:$0xff]
  %v21 = vld [vmem:[%s0 + $0x50] sm:$0xff]
  %v22 = vld [vmem:[%s0 + $0x58] sm:$0xff]
  %v23 = vld [vmem:[%s0 + $0x60] sm:$0xff]
  %v24 = vld [vmem:[%s0 + $0x68] sm:$0xff]
  %v25 = vld [vmem:[%s0 + $0x70] sm:$0xff]
  %v26 = vld [vmem:[%s0 + $0x78] sm:$0xff]
  %v27 = vld [vmem:[%s0 + $0x80] sm:$0xff]
  %v28 = vld [vmem:[%s0 + $0x88] sm:$0xff]
  %v29 = vld [vmem:[%s0 + $0x90] sm:$0xff]
  %v30 = vld [vmem:[%s0 + $0x98] sm:$0xff]
  %v31 = vld [vmem:[%s0 + $0xa0] sm:$0xff]
  %v32 = vld [vmem:[%s0 + $0xa8] sm:$0xff]
  %v33 = vld [vmem:[%s0 + $0xb0] sm:$0xff]
  %v34 = vld [vmem:[%s0 + $0xb8] sm:$0xff]
  %v35 = vld [vmem:[%s0 + $0xc0] sm:$0xff]
  %v36 = vld [vmem:[%s0 + $0xc8] sm:$0xff]
  %v37 = vld [vmem:[%s0 + $0xd0] sm:$0xff]
  %v38 = vld [vmem:[%s0 + $0xd8] sm:$0xff]
  %v39 = vld [vmem:[%s0 + $0xe0] sm:$0xff]
  %v40 = vld [vmem:[%s0 + $0xe8] sm:$0xff]
  %v41 = vld [vmem:[%s0 + $0xf0] sm:$0xff]
  %v42 = vld [vmem:[%s0 + $0xf8] sm:$0xff]
  %v43 = vld [vmem:[%s1] sm:$0xff]
  %v44 = vld [vmem:[%s1 + $0x8] sm:$0xff]
  %v45 = vld [vmem:[%s1 + $0x10] sm:$0xff]
  %v46 = vld [vmem:[%s1 + $0x18] sm:$0xff]
  %vm47 = vcmask 261120
  %v49 = vsel %vm47, %v11, 0
  %v52 = vsel %vm47, %v12, 0
  %v55 = vsel %vm47, %v13, 0
  %v58 = vsel %vm47, %v14, 0
  %v61 = vsel %vm47, %v15, 0
  %v64 = vsel %vm47, %v16, 0
  %v67 = vsel %vm47, %v17, 0
  %v70 = vsel %vm47, %v18, 0
  %v73 = vsel %vm47, %v19, 0
  %v76 = vsel %vm47, %v20, 0
  %v79 = vsel %vm47, %v21, 0
  %v82 = vsel %vm47, %v22, 0
  %v85 = vsel %vm47, %v23, 0
  %v88 = vsel %vm47, %v24, 0
  %v91 = vsel %vm47, %v25, 0
  %v94 = vsel %vm47, %v26, 0
  %v97 = vsel %vm47, %v27, 0
  %v100 = vsel %vm47, %v28, 0
  %v103 = vsel %vm47, %v29, 0
  %v106 = vsel %vm47, %v30, 0
  %v109 = vsel %vm47, %v31, 0
  %v112 = vsel %vm47, %v32, 0
  %v115 = vsel %vm47, %v33, 0
  %v118 = vsel %vm47, %v34, 0
  %v121 = vsel %vm47, %v35, 0
  %v124 = vsel %vm47, %v36, 0
  %v127 = vsel %vm47, %v37, 0
  %v130 = vsel %vm47, %v38, 0
  %v133 = vsel %vm47, %v39, 0
  %v136 = vsel %vm47, %v40, 0
  %v139 = vsel %vm47, %v41, 0
  %v142 = vsel %vm47, %v42, 0
  %144 = vmatpush.msra.mxu0 0.0
  %145 = vmatpush.msra.mxu0 0.0
  %146 = vmatpush.msra.mxu0 0.0
  %147 = vmatpush.msra.mxu0 0.0
  %148 = vmatpush.msra.mxu0 0.0
  %149 = vmatpush.msra.mxu0 0.0
  %150 = vmatpush.msra.mxu0 0.0
  %151 = vmatpush.msra.mxu0 0.0
  %152 = vmatpush.msra.mxu0 0.0
  %153 = vmatpush.msra.mxu0 0.0
  %154 = vmatpush.msra.mxu0 0.0
  %155 = vmatpush.msra.mxu0 0.0
  %156 = vmatpush.msra.mxu0 %v46
  %157 = vmatpush.msra.mxu0 %v45
  %158 = vmatpush.msra.mxu0 %v44
  %159 = vmatpush.msra.mxu0 %v43
  %160 = vmatmul.f32.gmra.mxu0 %v49
  %v161 = vpop.f32.mrf.mxu0
  %v162 = vadd.f32 0.0, %v161
  %163 = vmatmul.f32.gmra.mxu0 %v52
  %v164 = vpop.f32.mrf.mxu0
  %v165 = vadd.f32 0.0, %v164
  %166 = vmatmul.f32.gmra.mxu0 %v55
  %v167 = vpop.f32.mrf.mxu0
  %v168 = vadd.f32 0.0, %v167
  %169 = vmatmul.f32.gmra.mxu0 %v58
  %v170 = vpop.f32.mrf.mxu0
  %v171 = vadd.f32 0.0, %v170
  %172 = vmatmul.f32.gmra.mxu0 %v61
  %v173 = vpop.f32.mrf.mxu0
  %v174 = vadd.f32 0.0, %v173
  %175 = vmatmul.f32.gmra.mxu0 %v64
  %v176 = vpop.f32.mrf.mxu0
  %v177 = vadd.f32 0.0, %v176
  %178 = vmatmul.f32.gmra.mxu0 %v67
  %v179 = vpop.f32.mrf.mxu0
  %v180 = vadd.f32 0.0, %v179
  %181 = vmatmul.f32.gmra.mxu0 %v70
  %v182 = vpop.f32.mrf.mxu0
  %v183 = vadd.f32 0.0, %v182
  %184 = vmatmul.f32.gmra.mxu0 %v73
  %v185 = vpop.f32.mrf.mxu0
  %v186 = vadd.f32 0.0, %v185
  %187 = vmatmul.f32.gmra.mxu0 %v76
  %v188 = vpop.f32.mrf.mxu0
  %v189 = vadd.f32 0.0, %v188
  %190 = vmatmul.f32.gmra.mxu0 %v79
  %v191 = vpop.f32.mrf.mxu0
  %v192 = vadd.f32 0.0, %v191
  %193 = vmatmul.f32.gmra.mxu0 %v82
  %v194 = vpop.f32.mrf.mxu0
  %v195 = vadd.f32 0.0, %v194
  %196 = vmatmul.f32.gmra.mxu0 %v85
  %v197 = vpop.f32.mrf.mxu0
  %v198 = vadd.f32 0.0, %v197
  %199 = vmatmul.f32.gmra.mxu0 %v88
  %v200 = vpop.f32.mrf.mxu0
  %v201 = vadd.f32 0.0, %v200
  %202 = vmatmul.f32.gmra.mxu0 %v91
  %v203 = vpop.f32.mrf.mxu0
  %v204 = vadd.f32 0.0, %v203
  %205 = vmatmul.f32.gmra.mxu0 %v94
  %v206 = vpop.f32.mrf.mxu0
  %v207 = vadd.f32 0.0, %v206
  %208 = vmatmul.f32.gmra.mxu0 %v97
  %v209 = vpop.f32.mrf.mxu0
  %v210 = vadd.f32 0.0, %v209
  %211 = vmatmul.f32.gmra.mxu0 %v100
  %v212 = vpop.f32.mrf.mxu0
  %v213 = vadd.f32 0.0, %v212
  %214 = vmatmul.f32.gmra.mxu0 %v103
  %v215 = vpop.f32.mrf.mxu0
  %v216 = vadd.f32 0.0, %v215
  %217 = vmatmul.f32.gmra.mxu0 %v106
  %v218 = vpop.f32.mrf.mxu0
  %v219 = vadd.f32 0.0, %v218
  %220 = vmatmul.f32.gmra.mxu0 %v109
  %v221 = vpop.f32.mrf.mxu0
  %v222 = vadd.f32 0.0, %v221
  %223 = vmatmul.f32.gmra.mxu0 %v112
  %v224 = vpop.f32.mrf.mxu0
  %v225 = vadd.f32 0.0, %v224
  %226 = vmatmul.f32.gmra.mxu0 %v115
  %v227 = vpop.f32.mrf.mxu0
  %v228 = vadd.f32 0.0, %v227
  %229 = vmatmul.f32.gmra.mxu0 %v118
  %v230 = vpop.f32.mrf.mxu0
  %v231 = vadd.f32 0.0, %v230
  %232 = vmatmul.f32.gmra.mxu0 %v121
  %v233 = vpop.f32.mrf.mxu0
  %v234 = vadd.f32 0.0, %v233
  %235 = vmatmul.f32.gmra.mxu0 %v124
  %v236 = vpop.f32.mrf.mxu0
  %v237 = vadd.f32 0.0, %v236
  %238 = vmatmul.f32.gmra.mxu0 %v127
  %v239 = vpop.f32.mrf.mxu0
  %v240 = vadd.f32 0.0, %v239
  %241 = vmatmul.f32.gmra.mxu0 %v130
  %v242 = vpop.f32.mrf.mxu0
  %v243 = vadd.f32 0.0, %v242
  %244 = vmatmul.f32.gmra.mxu0 %v133
  %v245 = vpop.f32.mrf.mxu0
  %v246 = vadd.f32 0.0, %v245
  %247 = vmatmul.f32.gmra.mxu0 %v136
  %v248 = vpop.f32.mrf.mxu0
  %v249 = vadd.f32 0.0, %v248
  %250 = vmatmul.f32.gmra.mxu0 %v139
  %v251 = vpop.f32.mrf.mxu0
  %v252 = vadd.f32 0.0, %v251
  %253 = vmatmul.f32.gmra.mxu0 %v142
  %v254 = vpop.f32.mrf.mxu0
  %v255 = vadd.f32 0.0, %v254
  %256 = vdwg.mxu0
  %vm257 = vcmask 7168
  %258 = vst.msk [vmem:[%s2] sm:$0xff] %vm257, %v162
  %259 = vst.msk [vmem:[%s2 + $0x8] sm:$0xff] %vm257, %v165
  %260 = vst.msk [vmem:[%s2 + $0x10] sm:$0xff] %vm257, %v168
  %261 = vst.msk [vmem:[%s2 + $0x18] sm:$0xff] %vm257, %v171
  %262 = vst.msk [vmem:[%s2 + $0x20] sm:$0xff] %vm257, %v174
  %263 = vst.msk [vmem:[%s2 + $0x28] sm:$0xff] %vm257, %v177
  %264 = vst.msk [vmem:[%s2 + $0x30] sm:$0xff] %vm257, %v180
  %265 = vst.msk [vmem:[%s2 + $0x38] sm:$0xff] %vm257, %v183
  %266 = vst.msk [vmem:[%s2 + $0x40] sm:$0xff] %vm257, %v186
  %267 = vst.msk [vmem:[%s2 + $0x48] sm:$0xff] %vm257, %v189
  %268 = vst.msk [vmem:[%s2 + $0x50] sm:$0xff] %vm257, %v192
  %269 = vst.msk [vmem:[%s2 + $0x58] sm:$0xff] %vm257, %v195
  %270 = vst.msk [vmem:[%s2 + $0x60] sm:$0xff] %vm257, %v198
  %271 = vst.msk [vmem:[%s2 + $0x68] sm:$0xff] %vm257, %v201
  %272 = vst.msk [vmem:[%s2 + $0x70] sm:$0xff] %vm257, %v204
  %273 = vst.msk [vmem:[%s2 + $0x78] sm:$0xff] %vm257, %v207
  %274 = vst.msk [vmem:[%s2 + $0x80] sm:$0xff] %vm257, %v210
  %275 = vst.msk [vmem:[%s2 + $0x88] sm:$0xff] %vm257, %v213
  %276 = vst.msk [vmem:[%s2 + $0x90] sm:$0xff] %vm257, %v216
  %277 = vst.msk [vmem:[%s2 + $0x98] sm:$0xff] %vm257, %v219
  %278 = vst.msk [vmem:[%s2 + $0xa0] sm:$0xff] %vm257, %v222
  %279 = vst.msk [vmem:[%s2 + $0xa8] sm:$0xff] %vm257, %v225
  %280 = vst.msk [vmem:[%s2 + $0xb0] sm:$0xff] %vm257, %v228
  %281 = vst.msk [vmem:[%s2 + $0xb8] sm:$0xff] %vm257, %v231
  %282 = vst.msk [vmem:[%s2 + $0xc0] sm:$0xff] %vm257, %v234
  %283 = vst.msk [vmem:[%s2 + $0xc8] sm:$0xff] %vm257, %v237
  %284 = vst.msk [vmem:[%s2 + $0xd0] sm:$0xff] %vm257, %v240
  %285 = vst.msk [vmem:[%s2 + $0xd8] sm:$0xff] %vm257, %v243
  %286 = vst.msk [vmem:[%s2 + $0xe0] sm:$0xff] %vm257, %v246
  %287 = vst.msk [vmem:[%s2 + $0xe8] sm:$0xff] %vm257, %v249
  %288 = vst.msk [vmem:[%s2 + $0xf0] sm:$0xff] %vm257, %v252
  %289 = vst.msk [vmem:[%s2 + $0xf8] sm:$0xff] %vm257, %v255
  // Predicated region
  $region10: #{tpu_custom_call.1} parent=0 // pred_check
    _
  $region11: #{tpu_custom_call.1} parent=0 // pred_check_branch
    %291 = sbr.rel (0) target = $region13
  $region12: #{tpu_custom_call.1} parent=0 // pred_region
    _
  $region13: #{tpu_custom_call.1} parent=0 // pred_fallthru
    _
  // Predicated region
  $region14: #{tpu_custom_call.1} parent=0 // pred_check
    _
  $region15: #{tpu_custom_call.1} parent=0 // pred_check_branch
    %293 = sbr.rel (0) target = $region17
  $region16: #{tpu_custom_call.1} parent=0 // pred_region
    _
  $region17: #{tpu_custom_call.1} parent=0 // pred_fallthru
    _

</llo_original>
